<compile_context>
chip_gen: v7x
topology: tpu7x:2x2x1
jax: 0.10.0
libtpu: 0.0.40
codegen_flags: <defaults>
</compile_context>

<pallas_src>
import functools

import jax
import jax.numpy as jnp
from jax.experimental import pallas as pl
from jax.experimental.pallas import tpu as pltpu


def _round_up(x, m):
    return ((x + m - 1) // m) * m


def _mlp_kernel(x_ref, w1_ref, b1_ref, w2_ref, b2_ref, o_ref):
    # x_ref:  [TB, d_in]        f32 (cast to compute dtype per tile, on the VPU)
    # w1_ref: [d_in, d_hidden]  compute dtype (pre-transposed once in wrapper)
    # b1_ref: [1, d_hidden]     f32
    # w2_ref: [d_hidden, d_out] compute dtype (pre-transposed once in wrapper)
    # b2_ref: [1, d_out]        f32
    x = x_ref[...].astype(w1_ref.dtype)            # per-tile cast, nearly free

    # Canonical (M,K)x(K,N) matmuls on the MXU, f32 accumulation.
    h = jnp.dot(x, w1_ref[...], preferred_element_type=jnp.float32)
    h = jnp.maximum(h + b1_ref[...], 0.0)          # bias + ReLU in f32

    y = jnp.dot(h.astype(w2_ref.dtype), w2_ref[...],
                preferred_element_type=jnp.float32)
    o_ref[...] = (y + b2_ref[...]).astype(o_ref.dtype)


def _pick_vmem_limit(est_bytes):
    """Raise the scoped-VMEM limit only when needed; cap below physical VMEM."""
    try:
        phys = pltpu.get_tpu_info().vmem_capacity_bytes
    except Exception:
        phys = 64 * 1024 * 1024                    # conservative: v7x per-TC VMEM
    # Leave headroom for Mosaic internal scratch (MXU staging, etc.).
    cap = max(phys - 12 * 1024 * 1024, 16 * 1024 * 1024)
    want = int(est_bytes * 1.25) + (2 << 20)
    if want <= 16 * 1024 * 1024:                   # fits v5e's default scoped limit
        return None
    return int(min(want, cap))


@functools.partial(jax.jit,
                   static_argnames=("block_b", "compute_dtype", "out_dtype"))
def simple_forward(x, w1, b1, w2, b2, *, block_b=256,
                   compute_dtype=jnp.bfloat16, out_dtype=None):
    """Forward pass of `Simple`.

    x : [B, d_input]
    w1: [d_hidden, d_input], b1: [d_hidden]   (PyTorch nn.Linear layout)
    w2: [d_output, d_hidden], b2: [d_output]
    """
    B, d_in = x.shape
    d_hidden = w1.shape[0]
    d_out = w2.shape[0]
    out_dtype = x.dtype if out_dtype is None else out_dtype

    # --- batch tiling: multiple of 16 (bf16 sublane packing), no padding ----
    tb = min(block_b, _round_up(B, 16))
    grid = (pl.cdiv(B, tb),)                       # partial last tile is masked

    # --- one-time weight transpose fused with the one-time bf16 cast --------
    # (x stays f32; it is cast per-tile inside the kernel.)
    w1_c = w1.T.astype(compute_dtype)              # [d_in, d_hidden]
    w2_c = w2.T.astype(compute_dtype)              # [d_hidden, d_out]
    b1_r = b1.astype(jnp.float32).reshape(1, d_hidden)
    b2_r = b2.astype(jnp.float32).reshape(1, d_out)

    # --- VMEM budget (single-buffered resident weights, intermediates incl.)
    w_isz = jnp.dtype(compute_dtype).itemsize
    o_isz = jnp.dtype(out_dtype).itemsize
    est_bytes = (
        (d_in * d_hidden + d_hidden * d_out) * w_isz   # resident weights (Buffered(1))
        + (d_hidden + d_out) * 4                       # resident biases
        + 2 * tb * d_in * 4                            # x f32 double-buffer
        + 2 * tb * d_out * o_isz                       # out double-buffer
        + tb * d_in * w_isz                            # in-kernel bf16 copy of x
        + tb * d_hidden * (4 + w_isz)                  # f32 h + its bf16 copy
        + tb * d_out * 4                               # f32 y before store-cast
    )
    vmem_limit = _pick_vmem_limit(est_bytes)
    # TODO(synk): for very large d_hidden/d_out whose resident weights exceed
    # ~half of v7x's 64 MiB VMEM, add a fallback that tiles d_hidden/d_out as
    # extra "arbitrary" grid axes instead of keeping weights fully resident.

    cost = pl.CostEstimate(
        flops=2 * B * d_in * d_hidden + 2 * B * d_hidden * d_out,
        transcendentals=0,
        bytes_accessed=(B * d_in * 4
                        + (d_in * d_hidden + d_hidden * d_out) * w_isz
                        + (d_hidden + d_out) * 4
                        + B * d_out * o_isz),
    )

    resident = dict(pipeline_mode=pl.Buffered(1))   # constant index_map operands

    out = pl.pallas_call(
        _mlp_kernel,
        out_shape=jax.ShapeDtypeStruct((B, d_out), out_dtype),
        grid_spec=pltpu.PrefetchScalarGridSpec(
            num_scalar_prefetch=0,
            grid=grid,
            in_specs=[
                pl.BlockSpec((tb, d_in), lambda i: (i, 0)),              # x: batch-tiled, f32
                pl.BlockSpec((d_in, d_hidden), lambda i: (0, 0), **resident),   # w1ᵀ resident
                pl.BlockSpec((1, d_hidden), lambda i: (0, 0), **resident),      # b1 resident
                pl.BlockSpec((d_hidden, d_out), lambda i: (0, 0), **resident),  # w2ᵀ resident
                pl.BlockSpec((1, d_out), lambda i: (0, 0), **resident),         # b2 resident
            ],
            out_specs=pl.BlockSpec((tb, d_out), lambda i: (i, 0)),
        ),
        compiler_params=pltpu.CompilerParams(
            dimension_semantics=("parallel",),       # megacore-shardable on v7x
            vmem_limit_bytes=vmem_limit,
        ),
        cost_estimate=cost,
    )(x, w1_c, b1_r, w2_c, b2_r)

    return out


if __name__ == "__main__":
    # Small but non-degenerate shapes: feature dims lane-dense multiples of
    # 128 (unmasked stores); batch=512 with tb=256 → grid=(2,), so both v7x
    # TensorCores get work while each tile fills the 256-wide MXU rows.
    batch, d_input, d_hidden, d_output = 512, 128, 256, 128

    key = jax.random.PRNGKey(0)
    kx, kw1, kb1, kw2, kb2 = jax.random.split(key, 5)

    x = jax.random.normal(kx, (batch, d_input), dtype=jnp.float32)
    # PyTorch nn.Linear parameter shapes: weight [out, in], bias [out].
    w1 = jax.random.normal(kw1, (d_hidden, d_input), dtype=jnp.float32) * 0.1
    b1 = jax.random.normal(kb1, (d_hidden,), dtype=jnp.float32) * 0.1
    w2 = jax.random.normal(kw2, (d_output, d_hidden), dtype=jnp.float32) * 0.1
    b2 = jax.random.normal(kb2, (d_output,), dtype=jnp.float32) * 0.1

    out = simple_forward(x, w1, b1, w2, b2)
    jax.block_until_ready(out)
    assert out.shape == (batch, d_output)

    # Precision-matched reference (bf16 MXU inputs, f32 accumulation),
    # same math as the PyTorch module: relu(x @ w1.T + b1) @ w2.T + b2.
    xr = x.astype(jnp.bfloat16).astype(jnp.float32)
    w1r = w1.astype(jnp.bfloat16).astype(jnp.float32)
    w2r = w2.astype(jnp.bfloat16).astype(jnp.float32)
    h_ref = jnp.maximum(xr @ w1r.T + b1, 0.0)
    h_ref = h_ref.astype(jnp.bfloat16).astype(jnp.float32)
    ref = h_ref @ w2r.T + b2
    assert jnp.allclose(out, ref, atol=2e-3, rtol=2e-3), (
        float(jnp.max(jnp.abs(out - ref)))
    )

    # Loose sanity check against the pure-f32 reference as well.
    ref_f32 = jnp.maximum(x @ w1.T + b1, 0.0) @ w2.T + b2
    assert jnp.allclose(out, ref_f32, atol=5e-2, rtol=5e-2)

    print("KERNEL_OK")
</pallas_src>

<mosaic_0001>
module attributes {stable_mosaic.version = 11 : i64} {
  func.func @_mlp_kernel(%arg0: i32, %arg1: memref<256x128xf32, #tpu.memory_space<vmem>>, %arg2: memref<128x256xbf16, #tpu.memory_space<vmem>>, %arg3: memref<1x256xf32, #tpu.memory_space<vmem>>, %arg4: memref<256x128xbf16, #tpu.memory_space<vmem>>, %arg5: memref<1x128xf32, #tpu.memory_space<vmem>>, %arg6: memref<256x128xf32, #tpu.memory_space<vmem>>) attributes {dimension_semantics = [#tpu.dimension_semantics<parallel>], iteration_bounds = array<i64: 2>, scalar_prefetch = 0 : i64, scratch_operands = 0 : i64, tpu.core_type = #tpu.core_type<tc>, window_params = [{transform_indices = @transform_0, window_bounds = array<i64: 256, 128>}, {pipeline_mode = #tpu.pipeline_mode<synchronous>, transform_indices = @transform_1, window_bounds = array<i64: 128, 256>}, {pipeline_mode = #tpu.pipeline_mode<synchronous>, transform_indices = @transform_2, window_bounds = array<i64: 1, 256>}, {pipeline_mode = #tpu.pipeline_mode<synchronous>, transform_indices = @transform_3, window_bounds = array<i64: 256, 128>}, {pipeline_mode = #tpu.pipeline_mode<synchronous>, transform_indices = @transform_4, window_bounds = array<i64: 1, 128>}, {transform_indices = @transform_5, window_bounds = array<i64: 256, 128>}]} {
    %c0 = arith.constant 0 : index
    %c0_0 = arith.constant 0 : index
    %0 = vector.load %arg1[%c0, %c0_0] : memref<256x128xf32, #tpu.memory_space<vmem>>, vector<256x128xf32>
    %1 = arith.truncf %0 : vector<256x128xf32> to vector<256x128xbf16>
    %c0_1 = arith.constant 0 : index
    %c0_2 = arith.constant 0 : index
    %2 = vector.load %arg2[%c0_1, %c0_2] : memref<128x256xbf16, #tpu.memory_space<vmem>>, vector<128x256xbf16>
    %cst = arith.constant dense<0.000000e+00> : vector<256x256xf32>
    %3 = tpu.matmul %1, %2, %cst {dimension_numbers = #tpu.dot_dimension_numbers<[1], [0], [0], [1], [0, 0, 1, 1], [], []>} : vector<256x128xbf16>, vector<128x256xbf16>, vector<256x256xf32> -> vector<256x256xf32>
    %c0_3 = arith.constant 0 : index
    %c0_4 = arith.constant 0 : index
    %4 = vector.load %arg3[%c0_3, %c0_4] : memref<1x256xf32, #tpu.memory_space<vmem>>, vector<1x256xf32>
    %5 = vector.broadcast %4 : vector<1x256xf32> to vector<256x256xf32>
    %6 = arith.addf %3, %5 : vector<256x256xf32>
    %cst_5 = arith.constant 0.000000e+00 : f32
    %7 = vector.broadcast %cst_5 : f32 to vector<256x256xf32>
    %8 = arith.maximumf %6, %7 : vector<256x256xf32>
    %9 = arith.truncf %8 : vector<256x256xf32> to vector<256x256xbf16>
    %c0_6 = arith.constant 0 : index
    %c0_7 = arith.constant 0 : index
    %10 = vector.load %arg4[%c0_6, %c0_7] : memref<256x128xbf16, #tpu.memory_space<vmem>>, vector<256x128xbf16>
    %cst_8 = arith.constant dense<0.000000e+00> : vector<256x128xf32>
    %11 = tpu.matmul %9, %10, %cst_8 {dimension_numbers = #tpu.dot_dimension_numbers<[1], [0], [0], [1], [0, 0, 1, 1], [], []>} : vector<256x256xbf16>, vector<256x128xbf16>, vector<256x128xf32> -> vector<256x128xf32>
    %c0_9 = arith.constant 0 : index
    %c0_10 = arith.constant 0 : index
    %12 = vector.load %arg5[%c0_9, %c0_10] : memref<1x128xf32, #tpu.memory_space<vmem>>, vector<1x128xf32>
    %13 = vector.broadcast %12 : vector<1x128xf32> to vector<256x128xf32>
    %14 = arith.addf %11, %13 : vector<256x128xf32>
    %c0_11 = arith.constant 0 : index
    %c0_12 = arith.constant 0 : index
    %15 = vector.load %arg6[%c0_11, %c0_12] : memref<256x128xf32, #tpu.memory_space<vmem>>, vector<256x128xf32>
    tpu.vector_store %arg6[%c0_11, %c0_12], %14 {strides = array<i32>} : memref<256x128xf32, #tpu.memory_space<vmem>>, vector<256x128xf32>,
    return
  }
  func.func @transform_0(%arg0: i32) -> (i32, i32) {
    %c0_i32 = arith.constant 0 : i32
    %c0_i32_0 = arith.constant 0 : i32
    return %arg0, %c0_i32 : i32, i32
  }
  func.func @transform_1(%arg0: i32) -> (i32, i32) {
    %c0_i32 = arith.constant 0 : i32
    %c0_i32_0 = arith.constant 0 : i32
    %c0_i32_1 = arith.constant 0 : i32
    return %c0_i32, %c0_i32_0 : i32, i32
  }
  func.func @transform_2(%arg0: i32) -> (i32, i32) {
    %c0_i32 = arith.constant 0 : i32
    %c0_i32_0 = arith.constant 0 : i32
    %c0_i32_1 = arith.constant 0 : i32
    return %c0_i32, %c0_i32_0 : i32, i32
  }
  func.func @transform_3(%arg0: i32) -> (i32, i32) {
    %c0_i32 = arith.constant 0 : i32
    %c0_i32_0 = arith.constant 0 : i32
    %c0_i32_1 = arith.constant 0 : i32
    return %c0_i32, %c0_i32_0 : i32, i32
  }
  func.func @transform_4(%arg0: i32) -> (i32, i32) {
    %c0_i32 = arith.constant 0 : i32
    %c0_i32_0 = arith.constant 0 : i32
    %c0_i32_1 = arith.constant 0 : i32
    return %c0_i32, %c0_i32_0 : i32, i32
  }
  func.func @transform_5(%arg0: i32) -> (i32, i32) {
    %c0_i32 = arith.constant 0 : i32
    %c0_i32_0 = arith.constant 0 : i32
    return %arg0, %c0_i32 : i32, i32
  }
}

</mosaic_0001>

<llo_original>
// kernel: simple_forward.1
$region0: #{simple_forward.1}
  #allocation0 [shape = 'u32[]', space=smem, size = 0x4, offset = 0x4, fixed_abs, tag = 'smem constant byte address 0x4 - core index']
  #allocation1 [shape = 'u32[144,128]{1,0:T(1,128)}', space=vmem, size = 0x12000, scoped, tag = 'internal scratch']
  %s0 = inlined_call_operand.vmem [shape: f32[512,128], index: 0, kind: input, shape index: {}]
  %s1 = inlined_call_operand.vmem [shape: bf16[128,256], index: 1, kind: input, shape index: {}]
  %s2 = inlined_call_operand.vmem [shape: f32[1,256], index: 2, kind: input, shape index: {}]
  %s3 = inlined_call_operand.vmem [shape: bf16[256,128], index: 3, kind: input, shape index: {}]
  %s4 = inlined_call_operand.vmem [shape: f32[1,128], index: 4, kind: input, shape index: {}]
  %s5 = inlined_call_operand.hbm [shape: f32[512,128], index: 5, kind: output, shape index: {}]
  %s6 = sld [smem:[#allocation0]]
  $region53: #{simple_forward.1} parent=0
    _
  %s8 = ssub.s32 1, %s6
  %s9 = scalar_select 0, %s8, %s6
  $region1: #{simple_forward.1} parent=0
    #allocation2 [shape = 'u8[262144]{0}', space=vmem, size = 0x40000, scoped, tag = 'output window, operand 0']
    #allocation3 [shape = 's32[2]{0}', space=sflag, size = 0x8, scoped, tag = 'scoped memory for simple_forward.1']
    %10 = vsyncpa [#allocation3], 0
    %s11 = scalar_lea.sflag [#allocation3], 1
    %12 = vsyncpa %s11, 0
    loop: start=0, step=1, limit=4
    $region2: #{simple_forward.1} parent=1 // loop_pre_header
      _
    $region3: #{simple_forward.1} parent=1 // loop_header
      %s14 = sphi 0, %s18
      %p15 = scmp.ge.s32.totalorder %s14, 4
      %s24 = sphi 0, %s26
      %s27 = sphi 0, %s24
      %s28 = sphi 0, %s27
      %s44 = sphi 0, %s28
      %s48 = sphi 0, %s48
      %s50 = sphi 0, %s48
      %s51 = sphi 0, %s50
      %s65 = sphi 0, %s51
      %s69 = sphi 0, %s69
      %s71 = sphi 0, %s69
      %s72 = sphi 0, %s71
      %s86 = sphi 0, %s72
      %s90 = sphi 0, %s90
      %s92 = sphi 0, %s90
      %s93 = sphi 0, %s92
      %s107 = sphi 0, %s93
      %s111 = sphi 0, %s111
      %s113 = sphi 0, %s111
      %s114 = sphi 0, %s113
      %s128 = sphi 0, %s114
      %s134 = sphi 0, %s136
      %s137 = sphi 0, %s134
      %s138 = sphi 0, %s137
      %s154 = sphi 0, %s138
    $region4: #{simple_forward.1} parent=1 // loop_header_branch
      %17 = sbr.rel (%p15) target = $region8
    $region5: #{simple_forward.1} parent=1 // loop_body
      %s19 = ssub.s32 %s14, 1
      %s20 = ssub.s32 %s14, 2
      %s21 = sadd.s32 %s14, 1
      %s22 = ssub.s32 %s14, %s21
      %p23 = scmp.eq.s32.totalorder %s22, 0
      %s25 = sadd.s32 %s24, 1
      %s26 = scalar_select %p23, %s24, %s25
      %p29 = pneg %p23
      %p30 = scmp.eq.s32.totalorder %s14, 1
      %p31 = por %p29, %p30
      %p32 = scmp.ne.s32.totalorder %s24, %s27
      %p33 = scmp.eq.s32.totalorder %s14, 0
      %p34 = por %p32, %p33
      %p35 = scmp.ne.s32.totalorder %s24, %s27
      %p36 = scmp.eq.s32.totalorder %s19, 1
      %p37 = por %p35, %p36
      %p38 = scmp.ne.s32.totalorder %s27, %s28
      %p39 = scmp.eq.s32.totalorder %s19, 0
      %p40 = por %p38, %p39
      %p41 = scmp.ne.s32.totalorder %s27, %s28
      %p42 = scmp.eq.s32.totalorder %s20, 1
      %p43 = por %p41, %p42
      %p45 = scmp.ne.s32.totalorder %s28, %s44
      %p46 = scmp.eq.s32.totalorder %s20, 0
      %p47 = por %p45, %p46
      %s49 = sadd.s32 %s48, 1
      %p52 = scmp.eq.s32.totalorder %s14, 1
      %p53 = scmp.ne.s32.totalorder %s48, %s50
      %p54 = scmp.eq.s32.totalorder %s14, 0
      %p55 = por %p53, %p54
      %p56 = scmp.ne.s32.totalorder %s48, %s50
      %p57 = scmp.eq.s32.totalorder %s19, 1
      %p58 = por %p56, %p57
      %p59 = scmp.ne.s32.totalorder %s50, %s51
      %p60 = scmp.eq.s32.totalorder %s19, 0
      %p61 = por %p59, %p60
      %p62 = scmp.ne.s32.totalorder %s50, %s51
      %p63 = scmp.eq.s32.totalorder %s20, 1
      %p64 = por %p62, %p63
      %p66 = scmp.ne.s32.totalorder %s51, %s65
      %p67 = scmp.eq.s32.totalorder %s20, 0
      %p68 = por %p66, %p67
      %s70 = sadd.s32 %s69, 1
      %p73 = scmp.eq.s32.totalorder %s14, 1
      %p74 = scmp.ne.s32.totalorder %s69, %s71
      %p75 = scmp.eq.s32.totalorder %s14, 0
      %p76 = por %p74, %p75
      %p77 = scmp.ne.s32.totalorder %s69, %s71
      %p78 = scmp.eq.s32.totalorder %s19, 1
      %p79 = por %p77, %p78
      %p80 = scmp.ne.s32.totalorder %s71, %s72
      %p81 = scmp.eq.s32.totalorder %s19, 0
      %p82 = por %p80, %p81
      %p83 = scmp.ne.s32.totalorder %s71, %s72
      %p84 = scmp.eq.s32.totalorder %s20, 1
      %p85 = por %p83, %p84
      %p87 = scmp.ne.s32.totalorder %s72, %s86
      %p88 = scmp.eq.s32.totalorder %s20, 0
      %p89 = por %p87, %p88
      %s91 = sadd.s32 %s90, 1
      %p94 = scmp.eq.s32.totalorder %s14, 1
      %p95 = scmp.ne.s32.totalorder %s90, %s92
      %p96 = scmp.eq.s32.totalorder %s14, 0
      %p97 = por %p95, %p96
      %p98 = scmp.ne.s32.totalorder %s90, %s92
      %p99 = scmp.eq.s32.totalorder %s19, 1
      %p100 = por %p98, %p99
      %p101 = scmp.ne.s32.totalorder %s92, %s93
      %p102 = scmp.eq.s32.totalorder %s19, 0
      %p103 = por %p101, %p102
      %p104 = scmp.ne.s32.totalorder %s92, %s93
      %p105 = scmp.eq.s32.totalorder %s20, 1
      %p106 = por %p104, %p105
      %p108 = scmp.ne.s32.totalorder %s93, %s107
      %p109 = scmp.eq.s32.totalorder %s20, 0
      %p110 = por %p108, %p109
      %s112 = sadd.s32 %s111, 1
      %p115 = scmp.eq.s32.totalorder %s14, 1
      %p116 = scmp.ne.s32.totalorder %s111, %s113
      %p117 = scmp.eq.s32.totalorder %s14, 0
      %p118 = por %p116, %p117
      %p119 = scmp.ne.s32.totalorder %s111, %s113
      %p120 = scmp.eq.s32.totalorder %s19, 1
      %p121 = por %p119, %p120
      %p122 = scmp.ne.s32.totalorder %s113, %s114
      %p123 = scmp.eq.s32.totalorder %s19, 0
      %p124 = por %p122, %p123
      %p125 = scmp.ne.s32.totalorder %s113, %s114
      %p126 = scmp.eq.s32.totalorder %s20, 1
      %p127 = por %p125, %p126
      %p129 = scmp.ne.s32.totalorder %s114, %s128
      %p130 = scmp.eq.s32.totalorder %s20, 0
      %p131 = por %p129, %p130
      %s132 = ssub.s32 %s14, %s21
      %p133 = scmp.eq.s32.totalorder %s132, 0
      %s135 = sadd.s32 %s134, 1
      %s136 = scalar_select %p133, %s134, %s135
      %p139 = pneg %p133
      %p140 = scmp.eq.s32.totalorder %s14, 1
      %p141 = por %p139, %p140
      %p142 = scmp.ne.s32.totalorder %s134, %s137
      %p143 = scmp.eq.s32.totalorder %s14, 0
      %p144 = por %p142, %p143
      %p145 = scmp.ne.s32.totalorder %s134, %s137
      %p146 = scmp.eq.s32.totalorder %s19, 1
      %p147 = por %p145, %p146
      %p148 = scmp.ne.s32.totalorder %s137, %s138
      %p149 = scmp.eq.s32.totalorder %s19, 0
      %p150 = por %p148, %p149
      %p151 = scmp.ne.s32.totalorder %s137, %s138
      %p152 = scmp.eq.s32.totalorder %s20, 1
      %p153 = por %p151, %p152
      %p155 = scmp.ne.s32.totalorder %s138, %s154
      %p156 = scmp.eq.s32.totalorder %s20, 0
      %p157 = por %p155, %p156
      %p158 = scmp.le.s32.totalorder 1, %s14
      %p159 = scmp.lt.s32.totalorder %s14, 3
      %p160 = pnand %p158, %p159
      %p161 = pneg %p160
      // Predicated region
      $region9: #{simple_forward.1} parent=5 // pred_check
        _
      $region10: #{simple_forward.1} parent=5 // pred_check_branch
        %163 = sbr.rel (%p160) target = $region12
      $region11: #{simple_forward.1} parent=5 // pred_region
        %s164 = ssub.s32 %s14, 1
        // Predicated region
        $region13: #{simple_forward.1} parent=11 // pred_check
          %p165 = pneg %p61
        $region14: #{simple_forward.1} parent=11 // pred_check_branch
          %167 = sbr.rel (%p165) target = $region16
        $region15: #{simple_forward.1} parent=11 // pred_region
          _
        $region16: #{simple_forward.1} parent=11 // pred_fallthru
          _
        // Predicated region
        $region17: #{simple_forward.1} parent=11 // pred_check
          %p168 = pneg %p82
        $region18: #{simple_forward.1} parent=11 // pred_check_branch
          %170 = sbr.rel (%p168) target = $region20
        $region19: #{simple_forward.1} parent=11 // pred_region
          _
        $region20: #{simple_forward.1} parent=11 // pred_fallthru
          _
        // Predicated region
        $region21: #{simple_forward.1} parent=11 // pred_check
          %p171 = pneg %p103
        $region22: #{simple_forward.1} parent=11 // pred_check_branch
          %173 = sbr.rel (%p171) target = $region24
        $region23: #{simple_forward.1} parent=11 // pred_region
          _
        $region24: #{simple_forward.1} parent=11 // pred_fallthru
          _
        // Predicated region
        $region25: #{simple_forward.1} parent=11 // pred_check
          %p174 = pneg %p124
        $region26: #{simple_forward.1} parent=11 // pred_check_branch
          %176 = sbr.rel (%p174) target = $region28
        $region27: #{simple_forward.1} parent=11 // pred_region
          _
        $region28: #{simple_forward.1} parent=11 // pred_fallthru
          _
      $region12: #{simple_forward.1} parent=5 // pred_fallthru
        _
      %p177 = scmp.lt.s32.totalorder %s14, 2
      // Predicated region
      $region29: #{simple_forward.1} parent=5 // pred_check
        %p178 = pneg %p177
      $region30: #{simple_forward.1} parent=5 // pred_check_branch
        %180 = sbr.rel (%p178) target = $region32
      $region31: #{simple_forward.1} parent=5 // pred_region
        // Predicated region
        $region33: #{simple_forward.1} parent=31 // pred_check
          %p181 = pneg %p34
        $region34: #{simple_forward.1} parent=31 // pred_check_branch
          %183 = sbr.rel (%p181) target = $region36
        $region35: #{simple_forward.1} parent=31 // pred_region
          %s184 = smul.u32 32, %s14
          %p185 = scmp.lt.s32.totalorder %s184, 63
          %s186 = scalar_select %p185, %s184, 63
          %s187 = smul.addr %s186, 8
          %s188 = scalar_lea.vmem %s0, %s187
          %s189 = smul.u32 32, %s14
        $region36: #{simple_forward.1} parent=31 // pred_fallthru
          _
      $region32: #{simple_forward.1} parent=5 // pred_fallthru
        _
      %p190 = scmp.le.s32.totalorder 1, %s14
      %p191 = scmp.lt.s32.totalorder %s14, 3
      %p192 = pnand %p190, %p191
      %p193 = pneg %p192
      // Predicated region
      $region37: #{simple_forward.1} parent=5 // pred_check
        _
      $region38: #{simple_forward.1} parent=5 // pred_check_branch
        %195 = sbr.rel (%p192) target = $region40
      $region39: #{simple_forward.1} parent=5 // pred_region
        %s196 = ssub.s32 %s14, 1
        %s197 = smul.u32 32, %s19
        %p198 = scmp.lt.s32.totalorder %s197, 63
        %s199 = scalar_select %p198, %s197, 63
        %s200 = smul.addr %s199, 8
        %s201 = scalar_lea.vmem %s0, %s200
        %p202 = pneg %p40
        %p203 = pneg %p37
        %p204 = pneg %p61
        %p205 = pneg %p58
        %p206 = pneg %p82
        %p207 = pneg %p79
        %p208 = pneg %p103
        %p209 = pneg %p100
        %p210 = pneg %p124
        %p211 = pneg %p121
        %p212 = pneg %p150
        %p213 = pneg %p147
        %s214 = sand.u32 %s137, 1
        %s215 = scalar_lea.sflag [#allocation3], %s214
        %s216 = sand.u32 %s137, 1
        %s217 = smul.addr %s216, 256
        %s218 = scalar_lea.vmem [#allocation2], %s217
        %s219 = smul.u32 32, %s19
        %p220 = scmp.lt.s32.totalorder %s219, 63
        %s221 = scalar_select %p220, %s219, 63
        %s222 = smul.addr %s221, 8
        %s223 = scalar_lea.vmem %s0, %s222
        %s224 = smul.u32 32, %s19
        %s225 = smul.u32 32, %s19
        %v227 = vld [vmem:[%s223] sm:$0xff]
        %v228 = vld [vmem:[%s223 + $0x8] sm:$0xff]
        %v229 = vld [vmem:[%s223 + $0x10] sm:$0xff]
        %v230 = vld [vmem:[%s223 + $0x18] sm:$0xff]
        %v231 = vld [vmem:[%s223 + $0x20] sm:$0xff]
        %v232 = vld [vmem:[%s223 + $0x28] sm:$0xff]
        %v233 = vld [vmem:[%s223 + $0x30] sm:$0xff]
        %v234 = vld [vmem:[%s223 + $0x38] sm:$0xff]
        %v235 = vld [vmem:[%s223 + $0x40] sm:$0xff]
        %v236 = vld [vmem:[%s223 + $0x48] sm:$0xff]
        %v237 = vld [vmem:[%s223 + $0x50] sm:$0xff]
        %v238 = vld [vmem:[%s223 + $0x58] sm:$0xff]
        %v239 = vld [vmem:[%s223 + $0x60] sm:$0xff]
        %v240 = vld [vmem:[%s223 + $0x68] sm:$0xff]
        %v241 = vld [vmem:[%s223 + $0x70] sm:$0xff]
        %v242 = vld [vmem:[%s223 + $0x78] sm:$0xff]
        %v243 = vld [vmem:[%s223 + $0x80] sm:$0xff]
        %v244 = vld [vmem:[%s223 + $0x88] sm:$0xff]
        %v245 = vld [vmem:[%s223 + $0x90] sm:$0xff]
        %v246 = vld [vmem:[%s223 + $0x98] sm:$0xff]
        %v247 = vld [vmem:[%s223 + $0xa0] sm:$0xff]
        %v248 = vld [vmem:[%s223 + $0xa8] sm:$0xff]
        %v249 = vld [vmem:[%s223 + $0xb0] sm:$0xff]
        %v250 = vld [vmem:[%s223 + $0xb8] sm:$0xff]
        %v251 = vld [vmem:[%s223 + $0xc0] sm:$0xff]
        %v252 = vld [vmem:[%s223 + $0xc8] sm:$0xff]
        %v253 = vld [vmem:[%s223 + $0xd0] sm:$0xff]
        %v254 = vld [vmem:[%s223 + $0xd8] sm:$0xff]
        %v255 = vld [vmem:[%s223 + $0xe0] sm:$0xff]
        %v256 = vld [vmem:[%s223 + $0xe8] sm:$0xff]
        %v257 = vld [vmem:[%s223 + $0xf0] sm:$0xff]
        %v258 = vld [vmem:[%s223 + $0xf8] sm:$0xff]
        %v259 = vpack.c.bf16 %v228, %v227
        %v260 = vpack.c.bf16 %v230, %v229
        %v261 = vpack.c.bf16 %v232, %v231
        %v262 = vpack.c.bf16 %v234, %v233
        %v263 = vpack.c.bf16 %v236, %v235
        %v264 = vpack.c.bf16 %v238, %v237
        %v265 = vpack.c.bf16 %v240, %v239
        %v266 = vpack.c.bf16 %v242, %v241
        %v267 = vpack.c.bf16 %v244, %v243
        %v268 = vpack.c.bf16 %v246, %v245
        %v269 = vpack.c.bf16 %v248, %v247
        %v270 = vpack.c.bf16 %v250, %v249
        %v271 = vpack.c.bf16 %v252, %v251
        %v272 = vpack.c.bf16 %v254, %v253
        %v273 = vpack.c.bf16 %v256, %v255
        %v274 = vpack.c.bf16 %v258, %v257
        %v275 = vld [vmem:[%s1] sm:$0xff]
        %v276 = vld [vmem:[%s1 + $0x8] sm:$0xff]
        %v277 = vld [vmem:[%s1 + $0x10] sm:$0xff]
        %v278 = vld [vmem:[%s1 + $0x18] sm:$0xff]
        %v279 = vld [vmem:[%s1 + $0x20] sm:$0xff]
        %v280 = vld [vmem:[%s1 + $0x28] sm:$0xff]
        %v281 = vld [vmem:[%s1 + $0x30] sm:$0xff]
        %v282 = vld [vmem:[%s1 + $0x38] sm:$0xff]
        %v283 = vld [vmem:[%s1 + $0x40] sm:$0xff]
        %v284 = vld [vmem:[%s1 + $0x48] sm:$0xff]
        %v285 = vld [vmem:[%s1 + $0x50] sm:$0xff]
        %v286 = vld [vmem:[%s1 + $0x58] sm:$0xff]
        %v287 = vld [vmem:[%s1 + $0x60] sm:$0xff]
        %v288 = vld [vmem:[%s1 + $0x68] sm:$0xff]
        %v289 = vld [vmem:[%s1 + $0x70] sm:$0xff]
        %v290 = vld [vmem:[%s1 + $0x78] sm:$0xff]
        %v291 = vld [vmem:[%s2] sm:$0x3]
        %v293 = vlaneseq
        %v294 = vshrl.u32 %v293, 7
        %v295 = vsub.s32 0, %v294
        %v296 = vrot.slane %v291, %v295
        %v297 = vlaneseq
        %v298 = vshrl.u32 %v297, 7
        %v299 = vsub.s32 1, %v298
        %v300 = vrot.slane %v291, %v299
        %v319 = vunpack.c.l.b16 %v275
        %v320 = vunpack.c.h.b16 %v275
        %v321 = vunpack.c.l.b16 %v276
        %v322 = vunpack.c.h.b16 %v276
        %v323 = vunpack.c.l.b16 %v277
        %v324 = vunpack.c.h.b16 %v277
        %v325 = vunpack.c.l.b16 %v278
        %v326 = vunpack.c.h.b16 %v278
        %v327 = vunpack.c.l.b16 %v279
        %v328 = vunpack.c.h.b16 %v279
        %v329 = vunpack.c.l.b16 %v280
        %v330 = vunpack.c.h.b16 %v280
        %v331 = vunpack.c.l.b16 %v281
        %v332 = vunpack.c.h.b16 %v281
        %v333 = vunpack.c.l.b16 %v282
        %v334 = vunpack.c.h.b16 %v282
        %v335 = vunpack.c.l.b16 %v283
        %v336 = vunpack.c.h.b16 %v283
        %v337 = vunpack.c.l.b16 %v284
        %v338 = vunpack.c.h.b16 %v284
        %v339 = vunpack.c.l.b16 %v285
        %v340 = vunpack.c.h.b16 %v285
        %v341 = vunpack.c.l.b16 %v286
        %v342 = vunpack.c.h.b16 %v286
        %v343 = vunpack.c.l.b16 %v287
        %v344 = vunpack.c.h.b16 %v287
        %v345 = vunpack.c.l.b16 %v288
        %v346 = vunpack.c.h.b16 %v288
        %v347 = vunpack.c.l.b16 %v289
        %v348 = vunpack.c.h.b16 %v289
        %v349 = vunpack.c.l.b16 %v290
        %v350 = vunpack.c.h.b16 %v290
        %v351 = vpack.c.b16 %v321, %v319
        %v352 = vpack.c.b16 %v322, %v320
        %v353 = vpack.c.b16 %v325, %v323
        %v354 = vpack.c.b16 %v326, %v324
        %v355 = vpack.c.b16 %v329, %v327
        %v356 = vpack.c.b16 %v330, %v328
        %v357 = vpack.c.b16 %v333, %v331
        %v358 = vpack.c.b16 %v334, %v332
        %v359 = vpack.c.b16 %v337, %v335
        %v360 = vpack.c.b16 %v338, %v336
        %v361 = vpack.c.b16 %v341, %v339
        %v362 = vpack.c.b16 %v342, %v340
        %v363 = vpack.c.b16 %v345, %v343
        %v364 = vpack.c.b16 %v346, %v344
        %v365 = vpack.c.b16 %v349, %v347
        %v366 = vpack.c.b16 %v350, %v348
        %383 = vmatprep.subr.bf16.mxu0 %v352
        %384 = vmatpush1.bf16.msra.mxu0 %v351
        %385 = vmatprep.subr.bf16.mxu0 %v354
        %386 = vmatpush1.bf16.msra.mxu0 %v353
        %387 = vmatprep.subr.bf16.mxu0 %v356
        %388 = vmatpush1.bf16.msra.mxu0 %v355
        %389 = vmatprep.subr.bf16.mxu0 %v358
        %390 = vmatpush1.bf16.msra.mxu0 %v357
        %391 = vmatprep.subr.bf16.mxu0 %v360
        %392 = vmatpush1.bf16.msra.mxu0 %v359
        %393 = vmatprep.subr.bf16.mxu0 %v362
        %394 = vmatpush1.bf16.msra.mxu0 %v361
        %395 = vmatprep.subr.bf16.mxu0 %v364
        %396 = vmatpush1.bf16.msra.mxu0 %v363
        %397 = vmatprep.subr.bf16.mxu0 %v366
        %398 = vmatpush1.bf16.msra.mxu0 %v365
        %399 = vmatprep.subr.bf16.mxu0 0
        %400 = vmatpush1.bf16.msra.mxu0 0
        %401 = vmatprep.subr.bf16.mxu0 0
        %402 = vmatpush1.bf16.msra.mxu0 0
        %403 = vmatprep.subr.bf16.mxu0 0
        %404 = vmatpush1.bf16.msra.mxu0 0
        %405 = vmatprep.subr.bf16.mxu0 0
        %406 = vmatpush1.bf16.msra.mxu0 0
        %407 = vmatprep.subr.bf16.mxu0 0
        %408 = vmatpush1.bf16.msra.mxu0 0
        %409 = vmatprep.subr.bf16.mxu0 0
        %410 = vmatpush1.bf16.msra.mxu0 0
        %411 = vmatprep.subr.bf16.mxu0 0
        %412 = vmatpush1.bf16.msra.mxu0 0
        %413 = vmatprep.subr.bf16.mxu0 0
        %414 = vmatpush1.bf16.msra.mxu0 0
        %415 = vmatprep.mubr.bf16.mxu0 0
        %416 = vmatmul.mubr.bf16.gmra.mrb[0].mxu0 %v259
        %v417 = vpop.f32.mrb[0].mxu0
        %v418 = vadd.f32 %v296, %v417
        %v419 = vpop.f32.mrb[0].mxu0
        %v420 = vadd.f32 %v300, %v419
        %v421 = vpop.f32.mrb[0].mxu0
        %v422 = vadd.f32 %v296, %v421
        %v423 = vpop.f32.mrb[0].mxu0
        %v424 = vadd.f32 %v300, %v423
        %425 = vmatprep.mubr.bf16.mxu0 0
        %426 = vmatmul.mubr.bf16.gmra.mrb[0].mxu0 %v260
        %v427 = vpop.f32.mrb[0].mxu0
        %v428 = vadd.f32 %v296, %v427
        %v429 = vpop.f32.mrb[0].mxu0
        %v430 = vadd.f32 %v300, %v429
        %v431 = vpop.f32.mrb[0].mxu0
        %v432 = vadd.f32 %v296, %v431
        %v433 = vpop.f32.mrb[0].mxu0
        %v434 = vadd.f32 %v300, %v433
        %435 = vmatprep.mubr.bf16.mxu0 0
        %436 = vmatmul.mubr.bf16.gmra.mrb[0].mxu0 %v261
        %v437 = vpop.f32.mrb[0].mxu0
        %v438 = vadd.f32 %v296, %v437
        %v439 = vpop.f32.mrb[0].mxu0
        %v440 = vadd.f32 %v300, %v439
        %v441 = vpop.f32.mrb[0].mxu0
        %v442 = vadd.f32 %v296, %v441
        %v443 = vpop.f32.mrb[0].mxu0
        %v444 = vadd.f32 %v300, %v443
        %445 = vmatprep.mubr.bf16.mxu0 0
        %446 = vmatmul.mubr.bf16.gmra.mrb[0].mxu0 %v262
        %v447 = vpop.f32.mrb[0].mxu0
        %v448 = vadd.f32 %v296, %v447
        %v449 = vpop.f32.mrb[0].mxu0
        %v450 = vadd.f32 %v300, %v449
        %v451 = vpop.f32.mrb[0].mxu0
        %v452 = vadd.f32 %v296, %v451
        %v453 = vpop.f32.mrb[0].mxu0
        %v454 = vadd.f32 %v300, %v453
        %455 = vmatprep.mubr.bf16.mxu0 0
        %456 = vmatmul.mubr.bf16.gmra.mrb[0].mxu0 %v263
        %v457 = vpop.f32.mrb[0].mxu0
        %v458 = vadd.f32 %v296, %v457
        %v459 = vpop.f32.mrb[0].mxu0
        %v460 = vadd.f32 %v300, %v459
        %v461 = vpop.f32.mrb[0].mxu0
        %v462 = vadd.f32 %v296, %v461
        %v463 = vpop.f32.mrb[0].mxu0
        %v464 = vadd.f32 %v300, %v463
        %465 = vmatprep.mubr.bf16.mxu0 0
        %466 = vmatmul.mubr.bf16.gmra.mrb[0].mxu0 %v264
        %v467 = vpop.f32.mrb[0].mxu0
        %v468 = vadd.f32 %v296, %v467
        %v469 = vpop.f32.mrb[0].mxu0
        %v470 = vadd.f32 %v300, %v469
        %v471 = vpop.f32.mrb[0].mxu0
        %v472 = vadd.f32 %v296, %v471
        %v473 = vpop.f32.mrb[0].mxu0
        %v474 = vadd.f32 %v300, %v473
        %475 = vmatprep.mubr.bf16.mxu0 0
        %476 = vmatmul.mubr.bf16.gmra.mrb[0].mxu0 %v265
        %v477 = vpop.f32.mrb[0].mxu0
        %v478 = vadd.f32 %v296, %v477
        %v479 = vpop.f32.mrb[0].mxu0
        %v480 = vadd.f32 %v300, %v479
        %v481 = vpop.f32.mrb[0].mxu0
        %v482 = vadd.f32 %v296, %v481
        %v483 = vpop.f32.mrb[0].mxu0
        %v484 = vadd.f32 %v300, %v483
        %485 = vmatprep.mubr.bf16.mxu0 0
        %486 = vmatmul.mubr.bf16.gmra.mrb[0].mxu0 %v266
        %v487 = vpop.f32.mrb[0].mxu0
        %v488 = vadd.f32 %v296, %v487
        %v489 = vpop.f32.mrb[0].mxu0
        %v490 = vadd.f32 %v300, %v489
        %v491 = vpop.f32.mrb[0].mxu0
        %v492 = vadd.f32 %v296, %v491
        %v493 = vpop.f32.mrb[0].mxu0
        %v494 = vadd.f32 %v300, %v493
        %495 = vmatprep.mubr.bf16.mxu0 0
        %496 = vmatmul.mubr.bf16.gmra.mrb[0].mxu0 %v267
        %v497 = vpop.f32.mrb[0].mxu0
        %v498 = vadd.f32 %v296, %v497
        %v499 = vpop.f32.mrb[0].mxu0
        %v500 = vadd.f32 %v300, %v499
        %v501 = vpop.f32.mrb[0].mxu0
        %v502 = vadd.f32 %v296, %v501
        %v503 = vpop.f32.mrb[0].mxu0
        %v504 = vadd.f32 %v300, %v503
        %505 = vmatprep.mubr.bf16.mxu0 0
        %506 = vmatmul.mubr.bf16.gmra.mrb[0].mxu0 %v268
        %v507 = vpop.f32.mrb[0].mxu0
        %v508 = vadd.f32 %v296, %v507
        %v509 = vpop.f32.mrb[0].mxu0
        %v510 = vadd.f32 %v300, %v509
        %v511 = vpop.f32.mrb[0].mxu0
        %v512 = vadd.f32 %v296, %v511
        %v513 = vpop.f32.mrb[0].mxu0
        %v514 = vadd.f32 %v300, %v513
        %515 = vmatprep.mubr.bf16.mxu0 0
        %516 = vmatmul.mubr.bf16.gmra.mrb[0].mxu0 %v269
        %v517 = vpop.f32.mrb[0].mxu0
        %v518 = vadd.f32 %v296, %v517
        %v519 = vpop.f32.mrb[0].mxu0
        %v520 = vadd.f32 %v300, %v519
        %v521 = vpop.f32.mrb[0].mxu0
        %v522 = vadd.f32 %v296, %v521
        %v523 = vpop.f32.mrb[0].mxu0
        %v524 = vadd.f32 %v300, %v523
        %525 = vmatprep.mubr.bf16.mxu0 0
        %526 = vmatmul.mubr.bf16.gmra.mrb[0].mxu0 %v270
        %v527 = vpop.f32.mrb[0].mxu0
        %v528 = vadd.f32 %v296, %v527
        %v529 = vpop.f32.mrb[0].mxu0
        %v530 = vadd.f32 %v300, %v529
        %v531 = vpop.f32.mrb[0].mxu0
        %v532 = vadd.f32 %v296, %v531
        %v533 = vpop.f32.mrb[0].mxu0
        %v534 = vadd.f32 %v300, %v533
        %535 = vmatprep.mubr.bf16.mxu0 0
        %536 = vmatmul.mubr.bf16.gmra.mrb[0].mxu0 %v271
        %v537 = vpop.f32.mrb[0].mxu0
        %v538 = vadd.f32 %v296, %v537
        %v539 = vpop.f32.mrb[0].mxu0
        %v540 = vadd.f32 %v300, %v539
        %v541 = vpop.f32.mrb[0].mxu0
        %v542 = vadd.f32 %v296, %v541
        %v543 = vpop.f32.mrb[0].mxu0
        %v544 = vadd.f32 %v300, %v543
        %545 = vmatprep.mubr.bf16.mxu0 0
        %546 = vmatmul.mubr.bf16.gmra.mrb[0].mxu0 %v272
        %v547 = vpop.f32.mrb[0].mxu0
        %v548 = vadd.f32 %v296, %v547
        %v549 = vpop.f32.mrb[0].mxu0
        %v550 = vadd.f32 %v300, %v549
        %v551 = vpop.f32.mrb[0].mxu0
        %v552 = vadd.f32 %v296, %v551
        %v553 = vpop.f32.mrb[0].mxu0
        %v554 = vadd.f32 %v300, %v553
        %555 = vmatprep.mubr.bf16.mxu0 0
        %556 = vmatmul.mubr.bf16.gmra.mrb[0].mxu0 %v273
        %v557 = vpop.f32.mrb[0].mxu0
        %v558 = vadd.f32 %v296, %v557
        %v559 = vpop.f32.mrb[0].mxu0
        %v560 = vadd.f32 %v300, %v559
        %v561 = vpop.f32.mrb[0].mxu0
        %v562 = vadd.f32 %v296, %v561
        %v563 = vpop.f32.mrb[0].mxu0
        %v564 = vadd.f32 %v300, %v563
        %565 = vmatprep.mubr.bf16.mxu0 0
        %566 = vmatmul.mubr.bf16.gmra.mrb[0].mxu0 %v274
        %v567 = vpop.f32.mrb[0].mxu0
        %v568 = vadd.f32 %v296, %v567
        %v569 = vpop.f32.mrb[0].mxu0
        %v570 = vadd.f32 %v300, %v569
        %v571 = vpop.f32.mrb[0].mxu0
        %v572 = vadd.f32 %v296, %v571
        %v573 = vpop.f32.mrb[0].mxu0
        %v574 = vadd.f32 %v300, %v573
        %575 = vdwg.mxu0
        %v576 = vmax.f32 %v418, 0.0
        %v577 = vmax.f32 %v420, 0.0
        %v578 = vmax.f32 %v422, 0.0
        %v579 = vmax.f32 %v424, 0.0
        %v580 = vmax.f32 %v428, 0.0
        %v581 = vmax.f32 %v430, 0.0
        %v582 = vmax.f32 %v432, 0.0
        %v583 = vmax.f32 %v434, 0.0
        %v584 = vmax.f32 %v438, 0.0
        %v585 = vmax.f32 %v440, 0.0
        %v586 = vmax.f32 %v442, 0.0
        %v587 = vmax.f32 %v444, 0.0
        %v588 = vmax.f32 %v448, 0.0
        %v589 = vmax.f32 %v450, 0.0
        %v590 = vmax.f32 %v452, 0.0
        %v591 = vmax.f32 %v454, 0.0
        %v592 = vmax.f32 %v458, 0.0
        %v593 = vmax.f32 %v460, 0.0
        %v594 = vmax.f32 %v462, 0.0
        %v595 = vmax.f32 %v464, 0.0
        %v596 = vmax.f32 %v468, 0.0
        %v597 = vmax.f32 %v470, 0.0
        %v598 = vmax.f32 %v472, 0.0
        %v599 = vmax.f32 %v474, 0.0
        %v600 = vmax.f32 %v478, 0.0
        %v601 = vmax.f32 %v480, 0.0
        %v602 = vmax.f32 %v482, 0.0
        %v603 = vmax.f32 %v484, 0.0
        %v604 = vmax.f32 %v488, 0.0
        %v605 = vmax.f32 %v490, 0.0
        %v606 = vmax.f32 %v492, 0.0
        %v607 = vmax.f32 %v494, 0.0
        %v608 = vmax.f32 %v498, 0.0
        %v609 = vmax.f32 %v500, 0.0
        %v610 = vmax.f32 %v502, 0.0
        %v611 = vmax.f32 %v504, 0.0
        %v612 = vmax.f32 %v508, 0.0
        %v613 = vmax.f32 %v510, 0.0
        %v614 = vmax.f32 %v512, 0.0
        %v615 = vmax.f32 %v514, 0.0
        %v616 = vmax.f32 %v518, 0.0
        %v617 = vmax.f32 %v520, 0.0
        %v618 = vmax.f32 %v522, 0.0
        %v619 = vmax.f32 %v524, 0.0
        %v620 = vmax.f32 %v528, 0.0
        %v621 = vmax.f32 %v530, 0.0
        %v622 = vmax.f32 %v532, 0.0
        %v623 = vmax.f32 %v534, 0.0
        %v624 = vmax.f32 %v538, 0.0
        %v625 = vmax.f32 %v540, 0.0
        %v626 = vmax.f32 %v542, 0.0
        %v627 = vmax.f32 %v544, 0.0
        %v628 = vmax.f32 %v548, 0.0
        %v629 = vmax.f32 %v550, 0.0
        %v630 = vmax.f32 %v552, 0.0
        %v631 = vmax.f32 %v554, 0.0
        %v632 = vmax.f32 %v558, 0.0
        %v633 = vmax.f32 %v560, 0.0
        %v634 = vmax.f32 %v562, 0.0
        %v635 = vmax.f32 %v564, 0.0
        %v636 = vmax.f32 %v568, 0.0
        %v637 = vmax.f32 %v570, 0.0
        %v638 = vmax.f32 %v572, 0.0
        %v639 = vmax.f32 %v574, 0.0
        %v640 = vpack.c.bf16 %v578, %v576
        %v641 = vpack.c.bf16 %v579, %v577
        %v642 = vpack.c.bf16 %v582, %v580
        %v643 = vpack.c.bf16 %v583, %v581
        %v644 = vpack.c.bf16 %v586, %v584
        %v645 = vpack.c.bf16 %v587, %v585
        %v646 = vpack.c.bf16 %v590, %v588
        %v647 = vpack.c.bf16 %v591, %v589
        %v648 = vpack.c.bf16 %v594, %v592
        %v649 = vpack.c.bf16 %v595, %v593
        %v650 = vpack.c.bf16 %v598, %v596
        %v651 = vpack.c.bf16 %v599, %v597
        %v652 = vpack.c.bf16 %v602, %v600
        %v653 = vpack.c.bf16 %v603, %v601
        %v654 = vpack.c.bf16 %v606, %v604
        %v655 = vpack.c.bf16 %v607, %v605
        %v656 = vpack.c.bf16 %v610, %v608
        %v657 = vpack.c.bf16 %v611, %v609
        %v658 = vpack.c.bf16 %v614, %v612
        %v659 = vpack.c.bf16 %v615, %v613
        %v660 = vpack.c.bf16 %v618, %v616
        %v661 = vpack.c.bf16 %v619, %v617
        %v662 = vpack.c.bf16 %v622, %v620
        %v663 = vpack.c.bf16 %v623, %v621
        %v664 = vpack.c.bf16 %v626, %v624
        %v665 = vpack.c.bf16 %v627, %v625
        %v666 = vpack.c.bf16 %v630, %v628
        %v667 = vpack.c.bf16 %v631, %v629
        %v668 = vpack.c.bf16 %v634, %v632
        %v669 = vpack.c.bf16 %v635, %v633
        %v670 = vpack.c.bf16 %v638, %v636
        %v671 = vpack.c.bf16 %v639, %v637
        %v672 = vld [vmem:[%s3] sm:$0xf]
        %v673 = vld [vmem:[%s3 + $0x4] sm:$0xf]
        %v674 = vld [vmem:[%s3 + $0x8] sm:$0xf]
        %v675 = vld [vmem:[%s3 + $0xc] sm:$0xf]
        %v676 = vld [vmem:[%s3 + $0x10] sm:$0xf]
        %v677 = vld [vmem:[%s3 + $0x14] sm:$0xf]
        %v678 = vld [vmem:[%s3 + $0x18] sm:$0xf]
        %v679 = vld [vmem:[%s3 + $0x1c] sm:$0xf]
        %v680 = vld [vmem:[%s3 + $0x20] sm:$0xf]
        %v681 = vld [vmem:[%s3 + $0x24] sm:$0xf]
        %v682 = vld [vmem:[%s3 + $0x28] sm:$0xf]
        %v683 = vld [vmem:[%s3 + $0x2c] sm:$0xf]
        %v684 = vld [vmem:[%s3 + $0x30] sm:$0xf]
        %v685 = vld [vmem:[%s3 + $0x34] sm:$0xf]
        %v686 = vld [vmem:[%s3 + $0x38] sm:$0xf]
        %v687 = vld [vmem:[%s3 + $0x3c] sm:$0xf]
        %v688 = vld [vmem:[%s3 + $0x40] sm:$0xf]
        %v689 = vld [vmem:[%s3 + $0x44] sm:$0xf]
        %v690 = vld [vmem:[%s3 + $0x48] sm:$0xf]
        %v691 = vld [vmem:[%s3 + $0x4c] sm:$0xf]
        %v692 = vld [vmem:[%s3 + $0x50] sm:$0xf]
        %v693 = vld [vmem:[%s3 + $0x54] sm:$0xf]
        %v694 = vld [vmem:[%s3 + $0x58] sm:$0xf]
        %v695 = vld [vmem:[%s3 + $0x5c] sm:$0xf]
        %v696 = vld [vmem:[%s3 + $0x60] sm:$0xf]
        %v697 = vld [vmem:[%s3 + $0x64] sm:$0xf]
        %v698 = vld [vmem:[%s3 + $0x68] sm:$0xf]
        %v699 = vld [vmem:[%s3 + $0x6c] sm:$0xf]
        %v700 = vld [vmem:[%s3 + $0x70] sm:$0xf]
        %v701 = vld [vmem:[%s3 + $0x74] sm:$0xf]
        %v702 = vld [vmem:[%s3 + $0x78] sm:$0xf]
        %v703 = vld [vmem:[%s3 + $0x7c] sm:$0xf]
        %v704 = vld [vmem:[%s4] sm:$0x1]
        %v706 = vlaneseq
        %v707 = vshrl.u32 %v706, 7
        %v708 = vsub.s32 0, %v707
        %v709 = vrot.slane %v704, %v708
        %v743 = vunpack.c.l.b16 %v672
        %v744 = vunpack.c.l.b16 %v673
        %v745 = vunpack.c.l.b16 %v674
        %v746 = vunpack.c.l.b16 %v675
        %v747 = vunpack.c.l.b16 %v676
        %v748 = vunpack.c.l.b16 %v677
        %v749 = vunpack.c.l.b16 %v678
        %v750 = vunpack.c.l.b16 %v679
        %v751 = vunpack.c.l.b16 %v680
        %v752 = vunpack.c.l.b16 %v681
        %v753 = vunpack.c.l.b16 %v682
        %v754 = vunpack.c.l.b16 %v683
        %v755 = vunpack.c.l.b16 %v684
        %v756 = vunpack.c.l.b16 %v685
        %v757 = vunpack.c.l.b16 %v686
        %v758 = vunpack.c.l.b16 %v687
        %v759 = vunpack.c.l.b16 %v688
        %v760 = vunpack.c.l.b16 %v689
        %v761 = vunpack.c.l.b16 %v690
        %v762 = vunpack.c.l.b16 %v691
        %v763 = vunpack.c.l.b16 %v692
        %v764 = vunpack.c.l.b16 %v693
        %v765 = vunpack.c.l.b16 %v694
        %v766 = vunpack.c.l.b16 %v695
        %v767 = vunpack.c.l.b16 %v696
        %v768 = vunpack.c.l.b16 %v697
        %v769 = vunpack.c.l.b16 %v698
        %v770 = vunpack.c.l.b16 %v699
        %v771 = vunpack.c.l.b16 %v700
        %v772 = vunpack.c.l.b16 %v701
        %v773 = vunpack.c.l.b16 %v702
        %v774 = vunpack.c.l.b16 %v703
        %v775 = vpack.c.b16 %v744, %v743
        %v776 = vpack.c.b16 %v746, %v745
        %v777 = vpack.c.b16 %v748, %v747
        %v778 = vpack.c.b16 %v750, %v749
        %v779 = vpack.c.b16 %v752, %v751
        %v780 = vpack.c.b16 %v754, %v753
        %v781 = vpack.c.b16 %v756, %v755
        %v782 = vpack.c.b16 %v758, %v757
        %v783 = vpack.c.b16 %v760, %v759
        %v784 = vpack.c.b16 %v762, %v761
        %v785 = vpack.c.b16 %v764, %v763
        %v786 = vpack.c.b16 %v766, %v765
        %v787 = vpack.c.b16 %v768, %v767
        %v788 = vpack.c.b16 %v770, %v769
        %v789 = vpack.c.b16 %v772, %v771
        %v790 = vpack.c.b16 %v774, %v773
        %807 = vmatprep.subr.bf16.mxu0 0
        %808 = vmatpush1.bf16.msra.mxu0 %v775
        %809 = vmatprep.subr.bf16.mxu0 0
        %810 = vmatpush1.bf16.msra.mxu0 %v776
        %811 = vmatprep.subr.bf16.mxu0 0
        %812 = vmatpush1.bf16.msra.mxu0 %v777
        %813 = vmatprep.subr.bf16.mxu0 0
        %814 = vmatpush1.bf16.msra.mxu0 %v778
        %815 = vmatprep.subr.bf16.mxu0 0
        %816 = vmatpush1.bf16.msra.mxu0 %v779
        %817 = vmatprep.subr.bf16.mxu0 0
        %818 = vmatpush1.bf16.msra.mxu0 %v780
        %819 = vmatprep.subr.bf16.mxu0 0
        %820 = vmatpush1.bf16.msra.mxu0 %v781
        %821 = vmatprep.subr.bf16.mxu0 0
        %822 = vmatpush1.bf16.msra.mxu0 %v782
        %823 = vmatprep.subr.bf16.mxu0 0
        %824 = vmatpush1.bf16.msra.mxu0 %v783
        %825 = vmatprep.subr.bf16.mxu0 0
        %826 = vmatpush1.bf16.msra.mxu0 %v784
        %827 = vmatprep.subr.bf16.mxu0 0
        %828 = vmatpush1.bf16.msra.mxu0 %v785
        %829 = vmatprep.subr.bf16.mxu0 0
        %830 = vmatpush1.bf16.msra.mxu0 %v786
        %831 = vmatprep.subr.bf16.mxu0 0
        %832 = vmatpush1.bf16.msra.mxu0 %v787
        %833 = vmatprep.subr.bf16.mxu0 0
        %834 = vmatpush1.bf16.msra.mxu0 %v788
        %835 = vmatprep.subr.bf16.mxu0 0
        %836 = vmatpush1.bf16.msra.mxu0 %v789
        %837 = vmatprep.subr.bf16.mxu0 0
        %838 = vmatpush1.bf16.msra.mxu0 %v790
        %839 = vmatprep.mubr.bf16.mxu0 %v641
        %840 = vmatmul.mubr.bf16.gmra.mrb[0].mxu0 %v640
        %v841 = vpop.f32.mrb[0].mxu0
        %v842 = vadd.f32 %v709, %v841
        %v843 = vpop.f32.mrb[0].mxu0
        %v844 = vpop.f32.mrb[0].mxu0
        %v845 = vadd.f32 %v709, %v844
        %v846 = vpop.f32.mrb[0].mxu0
        %847 = vmatprep.mubr.bf16.mxu0 %v643
        %848 = vmatmul.mubr.bf16.gmra.mrb[0].mxu0 %v642
        %v849 = vpop.f32.mrb[0].mxu0
        %v850 = vadd.f32 %v709, %v849
        %v851 = vpop.f32.mrb[0].mxu0
        %v852 = vpop.f32.mrb[0].mxu0
        %v853 = vadd.f32 %v709, %v852
        %v854 = vpop.f32.mrb[0].mxu0
        %855 = vmatprep.mubr.bf16.mxu0 %v645
        %856 = vmatmul.mubr.bf16.gmra.mrb[0].mxu0 %v644
        %v857 = vpop.f32.mrb[0].mxu0
        %v858 = vadd.f32 %v709, %v857
        %v859 = vpop.f32.mrb[0].mxu0
        %v860 = vpop.f32.mrb[0].mxu0
        %v861 = vadd.f32 %v709, %v860
        %v862 = vpop.f32.mrb[0].mxu0
        %863 = vmatprep.mubr.bf16.mxu0 %v647
        %864 = vmatmul.mubr.bf16.gmra.mrb[0].mxu0 %v646
        %v865 = vpop.f32.mrb[0].mxu0
        %v866 = vadd.f32 %v709, %v865
        %v867 = vpop.f32.mrb[0].mxu0
        %v868 = vpop.f32.mrb[0].mxu0
        %v869 = vadd.f32 %v709, %v868
        %v870 = vpop.f32.mrb[0].mxu0
        %871 = vmatprep.mubr.bf16.mxu0 %v649
        %872 = vmatmul.mubr.bf16.gmra.mrb[0].mxu0 %v648
        %v873 = vpop.f32.mrb[0].mxu0
        %v874 = vadd.f32 %v709, %v873
        %v875 = vpop.f32.mrb[0].mxu0
        %v876 = vpop.f32.mrb[0].mxu0
        %v877 = vadd.f32 %v709, %v876
        %v878 = vpop.f32.mrb[0].mxu0
        %879 = vmatprep.mubr.bf16.mxu0 %v651
        %880 = vmatmul.mubr.bf16.gmra.mrb[0].mxu0 %v650
        %v881 = vpop.f32.mrb[0].mxu0
        %v882 = vadd.f32 %v709, %v881
        %v883 = vpop.f32.mrb[0].mxu0
        %v884 = vpop.f32.mrb[0].mxu0
        %v885 = vadd.f32 %v709, %v884
        %v886 = vpop.f32.mrb[0].mxu0
        %887 = vmatprep.mubr.bf16.mxu0 %v653
        %888 = vmatmul.mubr.bf16.gmra.mrb[0].mxu0 %v652
        %v889 = vpop.f32.mrb[0].mxu0
        %v890 = vadd.f32 %v709, %v889
        %v891 = vpop.f32.mrb[0].mxu0
        %v892 = vpop.f32.mrb[0].mxu0
        %v893 = vadd.f32 %v709, %v892
        %v894 = vpop.f32.mrb[0].mxu0
        %895 = vmatprep.mubr.bf16.mxu0 %v655
        %896 = vmatmul.mubr.bf16.gmra.mrb[0].mxu0 %v654
        %v897 = vpop.f32.mrb[0].mxu0
        %v898 = vadd.f32 %v709, %v897
        %v899 = vpop.f32.mrb[0].mxu0
        %v900 = vpop.f32.mrb[0].mxu0
        %v901 = vadd.f32 %v709, %v900
        %v902 = vpop.f32.mrb[0].mxu0
        %903 = vmatprep.mubr.bf16.mxu0 %v657
        %904 = vmatmul.mubr.bf16.gmra.mrb[0].mxu0 %v656
        %v905 = vpop.f32.mrb[0].mxu0
        %v906 = vadd.f32 %v709, %v905
        %v907 = vpop.f32.mrb[0].mxu0
        %v908 = vpop.f32.mrb[0].mxu0
        %v909 = vadd.f32 %v709, %v908
        %v910 = vpop.f32.mrb[0].mxu0
        %911 = vmatprep.mubr.bf16.mxu0 %v659
        %912 = vmatmul.mubr.bf16.gmra.mrb[0].mxu0 %v658
        %v913 = vpop.f32.mrb[0].mxu0
        %v914 = vadd.f32 %v709, %v913
        %v915 = vpop.f32.mrb[0].mxu0
        %v916 = vpop.f32.mrb[0].mxu0
        %v917 = vadd.f32 %v709, %v916
        %v918 = vpop.f32.mrb[0].mxu0
        %919 = vmatprep.mubr.bf16.mxu0 %v661
        %920 = vmatmul.mubr.bf16.gmra.mrb[0].mxu0 %v660
        %v921 = vpop.f32.mrb[0].mxu0
        %v922 = vadd.f32 %v709, %v921
        %v923 = vpop.f32.mrb[0].mxu0
        %v924 = vpop.f32.mrb[0].mxu0
        %v925 = vadd.f32 %v709, %v924
        %v926 = vpop.f32.mrb[0].mxu0
        %927 = vmatprep.mubr.bf16.mxu0 %v663
        %928 = vmatmul.mubr.bf16.gmra.mrb[0].mxu0 %v662
        %v929 = vpop.f32.mrb[0].mxu0
        %v930 = vadd.f32 %v709, %v929
        %v931 = vpop.f32.mrb[0].mxu0
        %v932 = vpop.f32.mrb[0].mxu0
        %v933 = vadd.f32 %v709, %v932
        %v934 = vpop.f32.mrb[0].mxu0
        %935 = vmatprep.mubr.bf16.mxu0 %v665
        %936 = vmatmul.mubr.bf16.gmra.mrb[0].mxu0 %v664
        %v937 = vpop.f32.mrb[0].mxu0
        %v938 = vadd.f32 %v709, %v937
        %v939 = vpop.f32.mrb[0].mxu0
        %v940 = vpop.f32.mrb[0].mxu0
        %v941 = vadd.f32 %v709, %v940
        %v942 = vpop.f32.mrb[0].mxu0
        %943 = vmatprep.mubr.bf16.mxu0 %v667
        %944 = vmatmul.mubr.bf16.gmra.mrb[0].mxu0 %v666
        %v945 = vpop.f32.mrb[0].mxu0
        %v946 = vadd.f32 %v709, %v945
        %v947 = vpop.f32.mrb[0].mxu0
        %v948 = vpop.f32.mrb[0].mxu0
        %v949 = vadd.f32 %v709, %v948
        %v950 = vpop.f32.mrb[0].mxu0
        %951 = vmatprep.mubr.bf16.mxu0 %v669
        %952 = vmatmul.mubr.bf16.gmra.mrb[0].mxu0 %v668
        %v953 = vpop.f32.mrb[0].mxu0
        %v954 = vadd.f32 %v709, %v953
        %v955 = vpop.f32.mrb[0].mxu0
        %v956 = vpop.f32.mrb[0].mxu0
        %v957 = vadd.f32 %v709, %v956
        %v958 = vpop.f32.mrb[0].mxu0
        %959 = vmatprep.mubr.bf16.mxu0 %v671
        %960 = vmatmul.mubr.bf16.gmra.mrb[0].mxu0 %v670
        %v961 = vpop.f32.mrb[0].mxu0
        %v962 = vadd.f32 %v709, %v961
        %v963 = vpop.f32.mrb[0].mxu0
        %v964 = vpop.f32.mrb[0].mxu0
        %v965 = vadd.f32 %v709, %v964
        %v966 = vpop.f32.mrb[0].mxu0
        %967 = vdwg.mxu0
        %968 = vst [vmem:[%s218] sm:$0xff] %v842
        %969 = vst [vmem:[%s218 + $0x8] sm:$0xff] %v845
        %970 = vst [vmem:[%s218 + $0x10] sm:$0xff] %v850
        %971 = vst [vmem:[%s218 + $0x18] sm:$0xff] %v853
        %972 = vst [vmem:[%s218 + $0x20] sm:$0xff] %v858
        %973 = vst [vmem:[%s218 + $0x28] sm:$0xff] %v861
        %974 = vst [vmem:[%s218 + $0x30] sm:$0xff] %v866
        %975 = vst [vmem:[%s218 + $0x38] sm:$0xff] %v869
        %976 = vst [vmem:[%s218 + $0x40] sm:$0xff] %v874
        %977 = vst [vmem:[%s218 + $0x48] sm:$0xff] %v877
        %978 = vst [vmem:[%s218 + $0x50] sm:$0xff] %v882
        %979 = vst [vmem:[%s218 + $0x58] sm:$0xff] %v885
        %980 = vst [vmem:[%s218 + $0x60] sm:$0xff] %v890
        %981 = vst [vmem:[%s218 + $0x68] sm:$0xff] %v893
        %982 = vst [vmem:[%s218 + $0x70] sm:$0xff] %v898
        %983 = vst [vmem:[%s218 + $0x78] sm:$0xff] %v901
        %984 = vst [vmem:[%s218 + $0x80] sm:$0xff] %v906
        %985 = vst [vmem:[%s218 + $0x88] sm:$0xff] %v909
        %986 = vst [vmem:[%s218 + $0x90] sm:$0xff] %v914
        %987 = vst [vmem:[%s218 + $0x98] sm:$0xff] %v917
        %988 = vst [vmem:[%s218 + $0xa0] sm:$0xff] %v922
        %989 = vst [vmem:[%s218 + $0xa8] sm:$0xff] %v925
        %990 = vst [vmem:[%s218 + $0xb0] sm:$0xff] %v930
        %991 = vst [vmem:[%s218 + $0xb8] sm:$0xff] %v933
        %992 = vst [vmem:[%s218 + $0xc0] sm:$0xff] %v938
        %993 = vst [vmem:[%s218 + $0xc8] sm:$0xff] %v941
        %994 = vst [vmem:[%s218 + $0xd0] sm:$0xff] %v946
        %995 = vst [vmem:[%s218 + $0xd8] sm:$0xff] %v949
        %996 = vst [vmem:[%s218 + $0xe0] sm:$0xff] %v954
        %997 = vst [vmem:[%s218 + $0xe8] sm:$0xff] %v957
        %998 = vst [vmem:[%s218 + $0xf0] sm:$0xff] %v962
        %999 = vst [vmem:[%s218 + $0xf8] sm:$0xff] %v965
        %s1000 = sand.u32 %s137, 1
        %s1001 = scalar_lea.sflag [#allocation3], %s1000
        %s1002 = sand.u32 %s137, 1
        %s1003 = smul.addr %s1002, 256
        %s1004 = scalar_lea.vmem [#allocation2], %s1003
        // Predicated region
        $region41: #{simple_forward.1} parent=39 // pred_check
          %p1005 = pneg %p147
        $region42: #{simple_forward.1} parent=39 // pred_check_branch
          %1007 = sbr.rel (%p1005) target = $region44
        $region43: #{simple_forward.1} parent=39 // pred_region
          %s1008 = smul.u32 32, %s19
          %s1010 = ssub.s32 4096, 4096
          %1011 = vsyncadd %s1001, %s1010
          %s1012 = smul.addr %s1008, 128
          %s1013 = scalar_lea.hbm %s5, %s1012
          %s1014 = sshll.u32 %s1004, 4
          %s1015 = int_to_ptr.vmem [resolvable:$true] %s1014
          %1020 = dma.vmem_to_hbm [thread:$0]  %s1015, 4096, %s1013, %s1001, 128, 128, 8
        $region44: #{simple_forward.1} parent=39 // pred_fallthru
          _
      $region40: #{simple_forward.1} parent=5 // pred_fallthru
        _
      %p1021 = scmp.le.s32.totalorder 2, %s14
      // Predicated region
      $region45: #{simple_forward.1} parent=5 // pred_check
        %p1022 = pneg %p1021
      $region46: #{simple_forward.1} parent=5 // pred_check_branch
        %1024 = sbr.rel (%p1022) target = $region48
      $region47: #{simple_forward.1} parent=5 // pred_region
        %s1025 = ssub.s32 %s14, 2
        // Predicated region
        $region49: #{simple_forward.1} parent=47 // pred_check
          %p1026 = pneg %p153
        $region50: #{simple_forward.1} parent=47 // pred_check_branch
          %1028 = sbr.rel (%p1026) target = $region52
        $region51: #{simple_forward.1} parent=47 // pred_region
          %s1029 = sand.u32 %s138, 1
          %s1030 = scalar_lea.sflag [#allocation3], %s1029
          %s1031 = sand.u32 %s138, 1
          %s1032 = smul.addr %s1031, 256
          %s1033 = scalar_lea.vmem [#allocation2], %s1032
          %1034 = dma.done %s1030, 4096
        $region52: #{simple_forward.1} parent=47 // pred_fallthru
          _
      $region48: #{simple_forward.1} parent=5 // pred_fallthru
        _
    $region6: #{simple_forward.1} parent=1 // loop_footer
      %s18 = sadd.s32 1, %s14
    $region7: #{simple_forward.1} parent=1 // loop_footer_branch
      %13 = sbr.rel target = $region3
    $region8: #{simple_forward.1} parent=1 // loop_exit
      _
    %1035 = vsyncpa [#allocation3], 1
    %s1036 = scalar_lea.sflag [#allocation3], 1
    %1037 = vsyncpa %s1036, 1

</llo_original>
